<compile_context>
chip_gen: v5e
topology: v5e:2x2
jax: 0.10.0
libtpu: 0.0.40
codegen_flags: <defaults>
</compile_context>

<pallas_src>
import jax
import jax.numpy as jnp
from jax.experimental import pallas as pl
from jax.experimental.pallas import tpu as pltpu


def _round_up(x, m):
    return (x + m - 1) // m * m


def _cdiv(a, b):
    return (a + b - 1) // b


def _pooler_kernel(x_ref, w_ref, b_ref, o_ref):
    # x_ref: (tm, H)   row tile of selected [CLS] tokens
    # w_ref: (H, tn)   column tile of the dense weight, laid out as (in, out)
    # b_ref: (1, tn)   bias tile
    # o_ref: (tm, tn)  output tile
    y = jnp.dot(x_ref[...], w_ref[...], preferred_element_type=jnp.float32)
    y = y + b_ref[...].astype(jnp.float32)        # f32 bias add (VPU slack under MXU/DMA)
    o_ref[...] = jnp.tanh(y).astype(o_ref.dtype)  # f32 tanh -> EUP slot (v5e-safe)


def _pick_tn(H, max_tn):
    """Largest multiple-of-128 column tile <= max_tn that divides H, else full H."""
    if H <= max_tn:
        return H
    tn = (max_tn // 128) * 128
    while tn >= 128:
        if H % tn == 0:
            return tn
        tn -= 128
    return H


def dense_tanh_pallas(x, weight_t, bias, *, max_tm=512, max_tn=512):
    """tanh(x @ weight_t + bias).  x: (B, H); weight_t: (H, H) = W.T (in, out); bias: (H,)."""
    B, H = x.shape
    # NOTE: weight_t must be the PyTorch nn.Linear weight (out, in) PRE-TRANSPOSED to
    # (in, out).  Both layouts are (H, H) so this can only be enforced by convention.
    assert weight_t.shape == (H, H)
    assert bias.shape == (H,)

    x_bytes = jnp.dtype(x.dtype).itemsize
    w_bytes = jnp.dtype(weight_t.dtype).itemsize
    b_bytes = jnp.dtype(bias.dtype).itemsize

    # Balanced row tiles: keeps padding < one sublane group per step instead of
    # rounding B up to a full multiple of the 512-row cap.
    sublane = max(8, 32 // x_bytes)              # 8 for f32, 16 for bf16, 32 for 8-bit
    n_row = _cdiv(B, max_tm)
    tm = _round_up(_cdiv(B, n_row), sublane)
    Bp = n_row * tm
    if Bp != B:
        x = jnp.pad(x, ((0, Bp - B), (0, 0)))    # padded rows -> tanh(bias), sliced off below

    # Output-column tiles: shards work across TCs (v7x) and bounds weight VMEM.
    tn = _pick_tn(H, max_tn)
    n_col = H // tn

    bias2d = bias.reshape(1, H)

    # Grid-constant weight/bias blocks need only a single pipeline buffer.
    resident = n_col == 1
    if resident:
        w_spec = pl.BlockSpec((H, tn), lambda i, j: (0, j),
                              pipeline_mode=pl.Buffered(buffer_count=1))
        b_spec = pl.BlockSpec((1, tn), lambda i, j: (0, j),
                              pipeline_mode=pl.Buffered(buffer_count=1))
        w_bufs = 1
    else:
        w_spec = pl.BlockSpec((H, tn), lambda i, j: (0, j))
        b_spec = pl.BlockSpec((1, tn), lambda i, j: (0, j))
        w_bufs = 2

    # VMEM budget: actual tile footprint + headroom, capped at 64 MiB (valid on v7x too).
    vmem_need = (w_bufs * H * tn * w_bytes
                 + w_bufs * tn * b_bytes
                 + 2 * tm * H * x_bytes          # double-buffered x row tiles
                 + 2 * tm * tn * x_bytes)        # double-buffered output tiles
    vmem_limit = min(max(int(vmem_need * 3 // 2) + (4 << 20), 32 << 20), 64 << 20)

    cost = pl.CostEstimate(
        flops=2 * B * H * H,
        transcendentals=B * H,
        bytes_accessed=(B * H * x_bytes          # x in
                        + H * H * w_bytes        # weight
                        + H * b_bytes            # bias
                        + B * H * x_bytes),      # out
    )

    out = pl.pallas_call(
        _pooler_kernel,
        out_shape=jax.ShapeDtypeStruct((Bp, H), x.dtype),
        grid_spec=pltpu.PrefetchScalarGridSpec(
            num_scalar_prefetch=0,
            grid=(n_row, n_col),
            in_specs=[
                pl.BlockSpec((tm, H), lambda i, j: (i, 0)),   # x row tile (K kept whole)
                w_spec,                                       # weight column tile
                b_spec,                                       # bias column tile
            ],
            out_specs=pl.BlockSpec((tm, tn), lambda i, j: (i, j)),
        ),
        compiler_params=pltpu.CompilerParams(
            dimension_semantics=("parallel", "parallel"),     # megacore-shardable
            vmem_limit_bytes=vmem_limit,
        ),
        cost_estimate=cost,
    )(x, weight_t, bias2d)
    return out[:B]


def bert_pooler_pallas(hidden_states, weight_t, bias, seq_lens=None, *,
                       use_pallas=None, max_tm=512, max_tn=512):
    """Pallas BertPooler forward.

    hidden_states: (total_tokens, H) packed (with seq_lens) or (B, S, H) batched.
    weight_t:      (H, H) nn.Linear weight pre-transposed to (in, out).
    bias:          (H,)
    seq_lens:      (num_seqs,) int32 or None (mirrors attn_metadata.seq_lens).
    """
    if seq_lens is not None:
        # Packed path: first token of each sequence = cumsum(seq_lens) - seq_lens.
        offsets = jnp.cumsum(seq_lens) - seq_lens
        # TODO(synk): for very large B (serving-scale), fold this gather into the kernel
        # via PrefetchScalarGridSpec(num_scalar_prefetch=1) + manual per-row DMA gather
        # (memory_space=pl.ANY); at pooler-sized B the XLA gather is negligible vs the
        # (H, H) weight DMA, so it stays in the wrapper.
        selected = jnp.take(hidden_states, offsets, axis=0)
    else:
        # Batched path: the [CLS] token.
        selected = hidden_states[:, 0, :]

    H = selected.shape[-1]
    if use_pallas is None:
        use_pallas = H >= 512   # tiny H: pallas_call overhead dominates, let XLA fuse
    if not use_pallas:
        y = jnp.dot(selected, weight_t, preferred_element_type=jnp.float32)
        return jnp.tanh(y + bias.astype(jnp.float32)).astype(selected.dtype)
    return dense_tanh_pallas(selected, weight_t, bias, max_tm=max_tm, max_tn=max_tn)


def bert_pooler_reference(hidden_states, weight_t, bias, seq_lens=None):
    if seq_lens is not None:
        offsets = jnp.cumsum(seq_lens) - seq_lens
        selected = hidden_states[offsets]
    else:
        selected = hidden_states[:, 0, :]
    y = jnp.dot(selected.astype(jnp.float32), weight_t.astype(jnp.float32))
    return jnp.tanh(y + bias.astype(jnp.float32))


if __name__ == "__main__":
    H = 256          # hidden_size (small test config)
    num_seqs = 5     # batch of sequences
    S = 8            # seq len for the batched path

    key = jax.random.PRNGKey(0)
    k_packed, k_batched, k_w, k_b = jax.random.split(key, 4)

    # PyTorch-style weight (out, in); pre-transpose to (in, out) for the kernel.
    w_pt = jax.random.normal(k_w, (H, H), dtype=jnp.float32) * 0.05
    weight_t = w_pt.T
    bias = jax.random.normal(k_b, (H,), dtype=jnp.float32) * 0.05

    # --- packed path (attn_metadata is not None), 2-column grid exercises N-tiling ---
    seq_lens = jnp.array([3, 5, 2, 6, 1], dtype=jnp.int32)
    total_tokens = int(seq_lens.sum())          # 17
    hs_packed = jax.random.normal(k_packed, (total_tokens, H), dtype=jnp.float32)

    out_packed = bert_pooler_pallas(hs_packed, weight_t, bias, seq_lens=seq_lens,
                                    use_pallas=True, max_tn=128)
    out_packed = jax.block_until_ready(out_packed)
    ref_packed = bert_pooler_reference(hs_packed, weight_t, bias, seq_lens=seq_lens)
    assert out_packed.shape == (num_seqs, H)
    assert jnp.allclose(out_packed, ref_packed, atol=2e-2, rtol=2e-2), \
        "packed-path mismatch vs reference"

    # --- batched path (attn_metadata is None), single resident weight block ---
    hs_batched = jax.random.normal(k_batched, (num_seqs, S, H), dtype=jnp.float32)
    out_batched = bert_pooler_pallas(hs_batched, weight_t, bias, seq_lens=None,
                                     use_pallas=True)
    out_batched = jax.block_until_ready(out_batched)
    ref_batched = bert_pooler_reference(hs_batched, weight_t, bias, seq_lens=None)
    assert out_batched.shape == (num_seqs, H)
    assert jnp.allclose(out_batched, ref_batched, atol=2e-2, rtol=2e-2), \
        "batched-path mismatch vs reference"

    # --- bf16 storage (perf-recommended): f32 accumulation preserved in-kernel ---
    out_bf16 = bert_pooler_pallas(hs_packed.astype(jnp.bfloat16),
                                  weight_t.astype(jnp.bfloat16),
                                  bias.astype(jnp.bfloat16),
                                  seq_lens=seq_lens, use_pallas=True, max_tn=128)
    out_bf16 = jax.block_until_ready(out_bf16)
    assert out_bf16.shape == (num_seqs, H)
    assert jnp.allclose(out_bf16.astype(jnp.float32), ref_packed, atol=5e-2, rtol=5e-2), \
        "bf16-path mismatch vs reference"

    print("KERNEL_OK")
</pallas_src>

<mosaic_0001>
module attributes {stable_mosaic.version = 11 : i64} {
  func.func @_pooler_kernel(%arg0: i32, %arg1: i32, %arg2: memref<8x256xf32, #tpu.memory_space<vmem>>, %arg3: memref<256x128xf32, #tpu.memory_space<vmem>>, %arg4: memref<1x128xf32, #tpu.memory_space<vmem>>, %arg5: memref<8x128xf32, #tpu.memory_space<vmem>>) attributes {dimension_semantics = [#tpu.dimension_semantics<parallel>, #tpu.dimension_semantics<parallel>], iteration_bounds = array<i64: 1, 2>, scalar_prefetch = 0 : i64, scratch_operands = 0 : i64, tpu.core_type = #tpu.core_type<tc>, window_params = [{transform_indices = @transform_0, window_bounds = array<i64: 8, 256>}, {transform_indices = @transform_1, window_bounds = array<i64: 256, 128>}, {transform_indices = @transform_2, window_bounds = array<i64: 1, 128>}, {transform_indices = @transform_3, window_bounds = array<i64: 8, 128>}]} {
    %c0 = arith.constant 0 : index
    %c0_0 = arith.constant 0 : index
    %0 = vector.load %arg2[%c0, %c0_0] : memref<8x256xf32, #tpu.memory_space<vmem>>, vector<8x256xf32>
    %c0_1 = arith.constant 0 : index
    %c0_2 = arith.constant 0 : index
    %1 = vector.load %arg3[%c0_1, %c0_2] : memref<256x128xf32, #tpu.memory_space<vmem>>, vector<256x128xf32>
    %cst = arith.constant dense<0.000000e+00> : vector<8x128xf32>
    %2 = tpu.matmul %0, %1, %cst {dimension_numbers = #tpu.dot_dimension_numbers<[1], [0], [0], [1], [0, 0, 1, 1], [], []>} : vector<8x256xf32>, vector<256x128xf32>, vector<8x128xf32> -> vector<8x128xf32>
    %c0_3 = arith.constant 0 : index
    %c0_4 = arith.constant 0 : index
    %3 = vector.load %arg4[%c0_3, %c0_4] : memref<1x128xf32, #tpu.memory_space<vmem>>, vector<1x128xf32>
    %4 = vector.broadcast %3 : vector<1x128xf32> to vector<8x128xf32>
    %5 = arith.addf %2, %4 : vector<8x128xf32>
    %6 = math.tanh %5 : vector<8x128xf32>
    %c0_5 = arith.constant 0 : index
    %c0_6 = arith.constant 0 : index
    %7 = vector.load %arg5[%c0_5, %c0_6] : memref<8x128xf32, #tpu.memory_space<vmem>>, vector<8x128xf32>
    tpu.vector_store %arg5[%c0_5, %c0_6], %6 {strides = array<i32>} : memref<8x128xf32, #tpu.memory_space<vmem>>, vector<8x128xf32>,
    return
  }
  func.func @transform_0(%arg0: i32, %arg1: i32) -> (i32, i32) {
    %c0_i32 = arith.constant 0 : i32
    %c0_i32_0 = arith.constant 0 : i32
    return %arg0, %c0_i32 : i32, i32
  }
  func.func @transform_1(%arg0: i32, %arg1: i32) -> (i32, i32) {
    %c0_i32 = arith.constant 0 : i32
    %c0_i32_0 = arith.constant 0 : i32
    return %c0_i32, %arg1 : i32, i32
  }
  func.func @transform_2(%arg0: i32, %arg1: i32) -> (i32, i32) {
    %c0_i32 = arith.constant 0 : i32
    %c0_i32_0 = arith.constant 0 : i32
    return %c0_i32, %arg1 : i32, i32
  }
  func.func @transform_3(%arg0: i32, %arg1: i32) -> (i32, i32) {
    %c0_i32 = arith.constant 0 : i32
    return %arg0, %arg1 : i32, i32
  }
}

</mosaic_0001>

<llo_original>
// kernel: tpu_custom_call.1
$region0: #{tpu_custom_call.1}
  #allocation0 [shape = 'u32[]', space=smem, size = 0x4, offset = 0x4, fixed_abs, tag = 'smem constant byte address 0x4 - core index']
  #allocation1 [shape = 'u32[72,128]{1,0:T(1,128)}', space=vmem, size = 0x9000, scoped, tag = 'internal scratch']
  %s0 = inlined_call_operand.hbm [shape: f32[8,256], index: 0, kind: input, shape index: {}]
  %s1 = inlined_call_operand.hbm [shape: f32[256,256], index: 1, kind: input, shape index: {}]
  %s2 = inlined_call_operand.hbm [shape: f32[1,256], index: 2, kind: input, shape index: {}]
  %s3 = inlined_call_operand.hbm [shape: f32[8,256], index: 3, kind: output, shape index: {}]
  %s4 = sld [smem:[#allocation0]]
  $region57: #{tpu_custom_call.1} parent=0
    _
  %s6 = ssub.s32 1, %s4
  %s7 = scalar_select 0, %s6, %s4
  $region1: #{tpu_custom_call.1} parent=0
    #allocation2 [shape = 'u8[8192]{0}', space=vmem, size = 0x2000, scoped, tag = 'input window, operand 0, single buffered']
    #allocation3 [shape = 's32[2]{0}', space=sflag, size = 0x8, scoped, tag = 'scoped memory for tpu_custom_call.1']
    #allocation4 [shape = 's32[2]{0}', space=sflag, size = 0x8, scoped, tag = 'scoped memory for tpu_custom_call.1']
    #allocation5 [shape = 'u8[262144]{0}', space=vmem, size = 0x40000, scoped, tag = 'input window, operand 1']
    #allocation6 [shape = 's32[2]{0}', space=sflag, size = 0x8, scoped, tag = 'scoped memory for tpu_custom_call.1']
    #allocation7 [shape = 'u8[1024]{0}', space=vmem, size = 0x400, scoped, tag = 'input window, operand 2']
    #allocation8 [shape = 'u8[8192]{0}', space=vmem, size = 0x2000, scoped, tag = 'output window, operand 0']
    %8 = vsyncpa [#allocation3], 0
    %9 = vsyncpa [#allocation6], 0
    %s10 = scalar_lea.sflag [#allocation6], 1
    %11 = vsyncpa %s10, 0
    %12 = vsyncpa [#allocation4], 0
    %s13 = scalar_lea.sflag [#allocation4], 1
    %14 = vsyncpa %s13, 0
    loop: start=0, step=1, limit=4
    $region2: #{tpu_custom_call.1} parent=1 // loop_pre_header
      _
    $region3: #{tpu_custom_call.1} parent=1 // loop_header
      %s16 = sphi 0, %s20
      %p17 = scmp.ge.s32.totalorder %s16, 4
      %s23 = sphi 0, %s35
      %s24 = sphi 0, %s31
      %s25 = sphi 0, %s23
      %s26 = sphi 0, %s24
      %s27 = sphi 0, %s25
      %s28 = sphi 0, %s26
      %s38 = sphi 0, %s40
      %s41 = sphi 0, %s38
      %s42 = sphi 0, %s41
      %s58 = sphi 0, %s42
      %s64 = sphi 0, %s66
      %s67 = sphi 0, %s64
      %s68 = sphi 0, %s67
      %s84 = sphi 0, %s68
      %s90 = sphi 0, %s92
      %s93 = sphi 0, %s90
      %s94 = sphi 0, %s93
      %s110 = sphi 0, %s94
      %s118 = sphi 0, %s120
      %s121 = sphi 0, %s118
      %s122 = sphi 0, %s121
      %s138 = sphi 0, %s122
    $region4: #{tpu_custom_call.1} parent=1 // loop_header_branch
      %19 = sbr.rel (%p17) target = $region8
    $region5: #{tpu_custom_call.1} parent=1 // loop_body
      %s21 = ssub.s32 %s16, 1
      %s22 = ssub.s32 %s16, 2
      %s29 = sadd.s32 1, %s24
      %p30 = scmp.ge.s32.totalorder %s29, 2
      %s31 = scalar_select %p30, 0, %s29
      %s32 = sadd.s32 1, %s23
      %s33 = scalar_select %p30, %s32, %s23
      %p34 = scmp.ge.s32.totalorder %s33, 1
      %s35 = scalar_select %p34, 0, %s33
      %s36 = ssub.s32 %s23, %s35
      %p37 = scmp.eq.s32.totalorder %s36, 0
      %s39 = sadd.s32 %s38, 1
      %s40 = scalar_select %p37, %s38, %s39
      %p43 = pneg %p37
      %p44 = scmp.eq.s32.totalorder %s16, 1
      %p45 = por %p43, %p44
      %p46 = scmp.ne.s32.totalorder %s38, %s41
      %p47 = scmp.eq.s32.totalorder %s16, 0
      %p48 = por %p46, %p47
      %p49 = scmp.ne.s32.totalorder %s38, %s41
      %p50 = scmp.eq.s32.totalorder %s21, 1
      %p51 = por %p49, %p50
      %p52 = scmp.ne.s32.totalorder %s41, %s42
      %p53 = scmp.eq.s32.totalorder %s21, 0
      %p54 = por %p52, %p53
      %p55 = scmp.ne.s32.totalorder %s41, %s42
      %p56 = scmp.eq.s32.totalorder %s22, 1
      %p57 = por %p55, %p56
      %p59 = scmp.ne.s32.totalorder %s42, %s58
      %p60 = scmp.eq.s32.totalorder %s22, 0
      %p61 = por %p59, %p60
      %s62 = ssub.s32 %s24, %s31
      %p63 = scmp.eq.s32.totalorder %s62, 0
      %s65 = sadd.s32 %s64, 1
      %s66 = scalar_select %p63, %s64, %s65
      %p69 = pneg %p63
      %p70 = scmp.eq.s32.totalorder %s16, 1
      %p71 = por %p69, %p70
      %p72 = scmp.ne.s32.totalorder %s64, %s67
      %p73 = scmp.eq.s32.totalorder %s16, 0
      %p74 = por %p72, %p73
      %p75 = scmp.ne.s32.totalorder %s64, %s67
      %p76 = scmp.eq.s32.totalorder %s21, 1
      %p77 = por %p75, %p76
      %p78 = scmp.ne.s32.totalorder %s67, %s68
      %p79 = scmp.eq.s32.totalorder %s21, 0
      %p80 = por %p78, %p79
      %p81 = scmp.ne.s32.totalorder %s67, %s68
      %p82 = scmp.eq.s32.totalorder %s22, 1
      %p83 = por %p81, %p82
      %p85 = scmp.ne.s32.totalorder %s68, %s84
      %p86 = scmp.eq.s32.totalorder %s22, 0
      %p87 = por %p85, %p86
      %s88 = ssub.s32 %s24, %s31
      %p89 = scmp.eq.s32.totalorder %s88, 0
      %s91 = sadd.s32 %s90, 1
      %s92 = scalar_select %p89, %s90, %s91
      %p95 = pneg %p89
      %p96 = scmp.eq.s32.totalorder %s16, 1
      %p97 = por %p95, %p96
      %p98 = scmp.ne.s32.totalorder %s90, %s93
      %p99 = scmp.eq.s32.totalorder %s16, 0
      %p100 = por %p98, %p99
      %p101 = scmp.ne.s32.totalorder %s90, %s93
      %p102 = scmp.eq.s32.totalorder %s21, 1
      %p103 = por %p101, %p102
      %p104 = scmp.ne.s32.totalorder %s93, %s94
      %p105 = scmp.eq.s32.totalorder %s21, 0
      %p106 = por %p104, %p105
      %p107 = scmp.ne.s32.totalorder %s93, %s94
      %p108 = scmp.eq.s32.totalorder %s22, 1
      %p109 = por %p107, %p108
      %p111 = scmp.ne.s32.totalorder %s94, %s110
      %p112 = scmp.eq.s32.totalorder %s22, 0
      %p113 = por %p111, %p112
      %s114 = ssub.s32 %s23, %s35
      %s115 = ssub.s32 %s24, %s31
      %s116 = sor.u32 %s114, %s115
      %p117 = scmp.eq.s32.totalorder %s116, 0
      %s119 = sadd.s32 %s118, 1
      %s120 = scalar_select %p117, %s118, %s119
      %p123 = pneg %p117
      %p124 = scmp.eq.s32.totalorder %s16, 1
      %p125 = por %p123, %p124
      %p126 = scmp.ne.s32.totalorder %s118, %s121
      %p127 = scmp.eq.s32.totalorder %s16, 0
      %p128 = por %p126, %p127
      %p129 = scmp.ne.s32.totalorder %s118, %s121
      %p130 = scmp.eq.s32.totalorder %s21, 1
      %p131 = por %p129, %p130
      %p132 = scmp.ne.s32.totalorder %s121, %s122
      %p133 = scmp.eq.s32.totalorder %s21, 0
      %p134 = por %p132, %p133
      %p135 = scmp.ne.s32.totalorder %s121, %s122
      %p136 = scmp.eq.s32.totalorder %s22, 1
      %p137 = por %p135, %p136
      %p139 = scmp.ne.s32.totalorder %s122, %s138
      %p140 = scmp.eq.s32.totalorder %s22, 0
      %p141 = por %p139, %p140
      %p142 = scmp.le.s32.totalorder 1, %s16
      %p143 = scmp.lt.s32.totalorder %s16, 3
      %p144 = pnand %p142, %p143
      %p145 = pneg %p144
      // Predicated region
      $region9: #{tpu_custom_call.1} parent=5 // pred_check
        _
      $region10: #{tpu_custom_call.1} parent=5 // pred_check_branch
        %147 = sbr.rel (%p144) target = $region12
      $region11: #{tpu_custom_call.1} parent=5 // pred_region
        %s148 = ssub.s32 %s16, 1
        // Predicated region
        $region13: #{tpu_custom_call.1} parent=11 // pred_check
          %p149 = pneg %p54
        $region14: #{tpu_custom_call.1} parent=11 // pred_check_branch
          %151 = sbr.rel (%p149) target = $region16
        $region15: #{tpu_custom_call.1} parent=11 // pred_region
          %153 = vsyncadd [#allocation3], 0
          %s154 = smul.addr %s25, 2
          %s155 = smul.addr %s154, 8
          %s156 = scalar_lea.hbm %s0, %s155
          %s158 = sshll.u32 %s156, 4
          %s159 = int_to_ptr.hbm [resolvable:$true] %s158
          %s160 = sshll.u32 [#allocation2], 4
          %s161 = int_to_ptr.vmem [resolvable:$true] %s160
          %163 = dma.hbm_to_vmem [thread:$0]  %s159, 256, %s161, [#allocation3]
        $region16: #{tpu_custom_call.1} parent=11 // pred_fallthru
          _
      $region12: #{tpu_custom_call.1} parent=5 // pred_fallthru
        _
      %p164 = scmp.lt.s32.totalorder %s16, 2
      // Predicated region
      $region17: #{tpu_custom_call.1} parent=5 // pred_check
        %p165 = pneg %p164
      $region18: #{tpu_custom_call.1} parent=5 // pred_check_branch
        %167 = sbr.rel (%p165) target = $region20
      $region19: #{tpu_custom_call.1} parent=5 // pred_region
        // Predicated region
        $region21: #{tpu_custom_call.1} parent=19 // pred_check
          %p168 = pneg %p74
        $region22: #{tpu_custom_call.1} parent=19 // pred_check_branch
          %170 = sbr.rel (%p168) target = $region24
        $region23: #{tpu_custom_call.1} parent=19 // pred_region
          %s171 = sand.u32 %s16, 1
          %s172 = scalar_lea.sflag [#allocation6], %s171
          %s173 = sand.u32 %s64, 1
          %s174 = smul.addr %s173, 256
          %s175 = scalar_lea.vmem [#allocation5], %s174
          %177 = vsyncadd %s172, 0
          %s178 = smul.addr %s24, 8
          %s179 = scalar_lea.hbm %s1, %s178
          %s180 = sshll.u32 %s179, 4
          %s181 = int_to_ptr.hbm [resolvable:$true] %s180
          %s182 = sshll.u32 %s175, 4
          %s183 = int_to_ptr.vmem [resolvable:$true] %s182
          %188 = dma.hbm_to_vmem [thread:$0]  %s181, 4096, %s183, %s172, 256, 128, 8
        $region24: #{tpu_custom_call.1} parent=19 // pred_fallthru
          _
        // Predicated region
        $region25: #{tpu_custom_call.1} parent=19 // pred_check
          %p189 = pneg %p100
        $region26: #{tpu_custom_call.1} parent=19 // pred_check_branch
          %191 = sbr.rel (%p189) target = $region28
        $region27: #{tpu_custom_call.1} parent=19 // pred_region
          %s192 = sand.u32 %s16, 1
          %s193 = scalar_lea.sflag [#allocation6], %s192
          %s194 = sand.u32 %s90, 1
          %s195 = scalar_lea.vmem [#allocation7], %s194
          %197 = vsyncadd %s193, 0
          %s198 = scalar_lea.hbm %s2, %s24
          %s200 = sshll.u32 %s198, 4
          %s201 = int_to_ptr.hbm [resolvable:$true] %s200
          %s202 = sshll.u32 %s195, 4
          %s203 = int_to_ptr.vmem [resolvable:$true] %s202
          %205 = dma.hbm_to_vmem [thread:$0]  %s201, 16, %s203, %s193
        $region28: #{tpu_custom_call.1} parent=19 // pred_fallthru
          _
      $region20: #{tpu_custom_call.1} parent=5 // pred_fallthru
        _
      %p206 = scmp.le.s32.totalorder 1, %s16
      %p207 = scmp.lt.s32.totalorder %s16, 3
      %p208 = pnand %p206, %p207
      %p209 = pneg %p208
      // Predicated region
      $region29: #{tpu_custom_call.1} parent=5 // pred_check
        _
      $region30: #{tpu_custom_call.1} parent=5 // pred_check_branch
        %211 = sbr.rel (%p208) target = $region32
      $region31: #{tpu_custom_call.1} parent=5 // pred_region
        %s212 = ssub.s32 %s16, 1
        // Predicated region
        $region33: #{tpu_custom_call.1} parent=31 // pred_check
          %p213 = pneg %p54
        $region34: #{tpu_custom_call.1} parent=31 // pred_check_branch
          %215 = sbr.rel (%p213) target = $region36
        $region35: #{tpu_custom_call.1} parent=31 // pred_region
          %217 = dma.done [#allocation3], 256
        $region36: #{tpu_custom_call.1} parent=31 // pred_fallthru
          _
        %s218 = sand.u32 %s21, 1
        %s219 = scalar_lea.sflag [#allocation6], %s218
        %s220 = sand.u32 %s67, 1
        %s221 = smul.addr %s220, 256
        %s222 = scalar_lea.vmem [#allocation5], %s221
        // Predicated region
        $region37: #{tpu_custom_call.1} parent=31 // pred_check
          %p223 = pneg %p80
        $region38: #{tpu_custom_call.1} parent=31 // pred_check_branch
          %225 = sbr.rel (%p223) target = $region40
        $region39: #{tpu_custom_call.1} parent=31 // pred_region
          %227 = dma.done %s219, 4096
        $region40: #{tpu_custom_call.1} parent=31 // pred_fallthru
          _
        %s228 = sand.u32 %s21, 1
        %s229 = scalar_lea.sflag [#allocation6], %s228
        %s230 = sand.u32 %s93, 1
        %s231 = scalar_lea.vmem [#allocation7], %s230
        // Predicated region
        $region41: #{tpu_custom_call.1} parent=31 // pred_check
          %p232 = pneg %p106
        $region42: #{tpu_custom_call.1} parent=31 // pred_check_branch
          %234 = sbr.rel (%p232) target = $region44
        $region43: #{tpu_custom_call.1} parent=31 // pred_region
          %236 = dma.done %s229, 16
        $region44: #{tpu_custom_call.1} parent=31 // pred_fallthru
          _
        %p237 = pneg %p54
        %p238 = pneg %p51
        %s239 = sand.u32 %s21, 1
        %s240 = scalar_lea.sflag [#allocation6], %s239
        %s241 = sand.u32 %s67, 1
        %s242 = smul.addr %s241, 256
        %s243 = scalar_lea.vmem [#allocation5], %s242
        %p244 = pneg %p80
        %p245 = pneg %p77
        %s246 = sand.u32 %s21, 1
        %s247 = scalar_lea.sflag [#allocation6], %s246
        %s248 = sand.u32 %s93, 1
        %s249 = scalar_lea.vmem [#allocation7], %s248
        %p250 = pneg %p106
        %p251 = pneg %p103
        %p252 = pneg %p134
        %p253 = pneg %p131
        %s254 = sand.u32 %s121, 1
        %s255 = scalar_lea.sflag [#allocation4], %s254
        %s256 = sand.u32 %s121, 1
        %s257 = smul.addr %s256, 8
        %s258 = scalar_lea.vmem [#allocation8], %s257
        %v259 = vld [vmem:[#allocation2] sm:$0xff]
        %v260 = vld [vmem:[#allocation2 + $0x8] sm:$0xff]
        %v261 = vld [vmem:[%s222] sm:$0xff]
        %v262 = vld [vmem:[%s222 + $0x8] sm:$0xff]
        %v263 = vld [vmem:[%s222 + $0x10] sm:$0xff]
        %v264 = vld [vmem:[%s222 + $0x18] sm:$0xff]
        %v265 = vld [vmem:[%s222 + $0x20] sm:$0xff]
        %v266 = vld [vmem:[%s222 + $0x28] sm:$0xff]
        %v267 = vld [vmem:[%s222 + $0x30] sm:$0xff]
        %v268 = vld [vmem:[%s222 + $0x38] sm:$0xff]
        %v269 = vld [vmem:[%s222 + $0x40] sm:$0xff]
        %v270 = vld [vmem:[%s222 + $0x48] sm:$0xff]
        %v271 = vld [vmem:[%s222 + $0x50] sm:$0xff]
        %v272 = vld [vmem:[%s222 + $0x58] sm:$0xff]
        %v273 = vld [vmem:[%s222 + $0x60] sm:$0xff]
        %v274 = vld [vmem:[%s222 + $0x68] sm:$0xff]
        %v275 = vld [vmem:[%s222 + $0x70] sm:$0xff]
        %v276 = vld [vmem:[%s222 + $0x78] sm:$0xff]
        %v277 = vld [vmem:[%s222 + $0x80] sm:$0xff]
        %v278 = vld [vmem:[%s222 + $0x88] sm:$0xff]
        %v279 = vld [vmem:[%s222 + $0x90] sm:$0xff]
        %v280 = vld [vmem:[%s222 + $0x98] sm:$0xff]
        %v281 = vld [vmem:[%s222 + $0xa0] sm:$0xff]
        %v282 = vld [vmem:[%s222 + $0xa8] sm:$0xff]
        %v283 = vld [vmem:[%s222 + $0xb0] sm:$0xff]
        %v284 = vld [vmem:[%s222 + $0xb8] sm:$0xff]
        %v285 = vld [vmem:[%s222 + $0xc0] sm:$0xff]
        %v286 = vld [vmem:[%s222 + $0xc8] sm:$0xff]
        %v287 = vld [vmem:[%s222 + $0xd0] sm:$0xff]
        %v288 = vld [vmem:[%s222 + $0xd8] sm:$0xff]
        %v289 = vld [vmem:[%s222 + $0xe0] sm:$0xff]
        %v290 = vld [vmem:[%s222 + $0xe8] sm:$0xff]
        %v291 = vld [vmem:[%s222 + $0xf0] sm:$0xff]
        %v292 = vld [vmem:[%s222 + $0xf8] sm:$0xff]
        %v293 = vld [vmem:[%s231] sm:$0x1]
        %v295 = vperm.slane %v293, 0
        %297 = vmatpush.msra.mxu0 %v276
        %298 = vmatpush.msra.mxu0 %v275
        %299 = vmatpush.msra.mxu0 %v274
        %300 = vmatpush.msra.mxu0 %v273
        %301 = vmatpush.msra.mxu0 %v272
        %302 = vmatpush.msra.mxu0 %v271
        %303 = vmatpush.msra.mxu0 %v270
        %304 = vmatpush.msra.mxu0 %v269
        %305 = vmatpush.msra.mxu0 %v268
        %306 = vmatpush.msra.mxu0 %v267
        %307 = vmatpush.msra.mxu0 %v266
        %308 = vmatpush.msra.mxu0 %v265
        %309 = vmatpush.msra.mxu0 %v264
        %310 = vmatpush.msra.mxu0 %v263
        %311 = vmatpush.msra.mxu0 %v262
        %312 = vmatpush.msra.mxu0 %v261
        %313 = vmatmul.f32.gmra.mxu0 %v259
        %v314 = vpop.f32.mrf.mxu0
        %v315 = vadd.f32 %v295, %v314
        %316 = vdwg.mxu0
        %317 = vmatpush.msra.mxu0 %v292
        %318 = vmatpush.msra.mxu0 %v291
        %319 = vmatpush.msra.mxu0 %v290
        %320 = vmatpush.msra.mxu0 %v289
        %321 = vmatpush.msra.mxu0 %v288
        %322 = vmatpush.msra.mxu0 %v287
        %323 = vmatpush.msra.mxu0 %v286
        %324 = vmatpush.msra.mxu0 %v285
        %325 = vmatpush.msra.mxu0 %v284
        %326 = vmatpush.msra.mxu0 %v283
        %327 = vmatpush.msra.mxu0 %v282
        %328 = vmatpush.msra.mxu0 %v281
        %329 = vmatpush.msra.mxu0 %v280
        %330 = vmatpush.msra.mxu0 %v279
        %331 = vmatpush.msra.mxu0 %v278
        %332 = vmatpush.msra.mxu0 %v277
        %333 = vmatmul.f32.gmra.mxu0 %v260
        %v334 = vpop.f32.mrf.mxu0
        %v335 = vadd.f32 %v315, %v334
        %336 = vdwg.mxu0
        %v337 = vtanh.pop %v335
        %338 = vst [vmem:[%s258] sm:$0xff] %v337
        %s339 = sand.u32 %s121, 1
        %s340 = scalar_lea.sflag [#allocation4], %s339
        %s341 = sand.u32 %s121, 1
        %s342 = smul.addr %s341, 8
        %s343 = scalar_lea.vmem [#allocation8], %s342
        // Predicated region
        $region45: #{tpu_custom_call.1} parent=31 // pred_check
          %p344 = pneg %p131
        $region46: #{tpu_custom_call.1} parent=31 // pred_check_branch
          %346 = sbr.rel (%p344) target = $region48
        $region47: #{tpu_custom_call.1} parent=31 // pred_region
          %348 = vsyncadd %s340, 0
          %s349 = smul.addr %s25, 2
          %s350 = sadd.s32 %s26, %s349
          %s351 = smul.addr %s350, 8
          %s352 = scalar_lea.hbm %s3, %s351
          %s354 = sshll.u32 %s343, 4
          %s355 = int_to_ptr.vmem [resolvable:$true] %s354
          %s356 = sshll.u32 %s352, 4
          %s357 = int_to_ptr.hbm [resolvable:$true] %s356
          %359 = dma.vmem_to_hbm [thread:$0]  %s355, 128, %s357, %s340
        $region48: #{tpu_custom_call.1} parent=31 // pred_fallthru
          _
      $region32: #{tpu_custom_call.1} parent=5 // pred_fallthru
        _
      %p360 = scmp.le.s32.totalorder 2, %s16
      // Predicated region
      $region49: #{tpu_custom_call.1} parent=5 // pred_check
        %p361 = pneg %p360
      $region50: #{tpu_custom_call.1} parent=5 // pred_check_branch
        %363 = sbr.rel (%p361) target = $region52
      $region51: #{tpu_custom_call.1} parent=5 // pred_region
        %s364 = ssub.s32 %s16, 2
        // Predicated region
        $region53: #{tpu_custom_call.1} parent=51 // pred_check
          %p365 = pneg %p137
        $region54: #{tpu_custom_call.1} parent=51 // pred_check_branch
          %367 = sbr.rel (%p365) target = $region56
        $region55: #{tpu_custom_call.1} parent=51 // pred_region
          %s368 = sand.u32 %s122, 1
          %s369 = scalar_lea.sflag [#allocation4], %s368
          %s370 = sand.u32 %s122, 1
          %s371 = smul.addr %s370, 8
          %s372 = scalar_lea.vmem [#allocation8], %s371
          %374 = dma.done %s369, 128
        $region56: #{tpu_custom_call.1} parent=51 // pred_fallthru
          _
      $region52: #{tpu_custom_call.1} parent=5 // pred_fallthru
        _
    $region6: #{tpu_custom_call.1} parent=1 // loop_footer
      %s20 = sadd.s32 1, %s16
    $region7: #{tpu_custom_call.1} parent=1 // loop_footer_branch
      %15 = sbr.rel target = $region3
    $region8: #{tpu_custom_call.1} parent=1 // loop_exit
      _
    %375 = vsyncpa [#allocation3], 1
    %s376 = scalar_lea.sflag [#allocation3], 1
    %377 = vsyncpa %s376, 1
    %378 = vsyncpa [#allocation6], 1
    %s379 = scalar_lea.sflag [#allocation6], 1
    %380 = vsyncpa %s379, 1
    %381 = vsyncpa [#allocation4], 1
    %s382 = scalar_lea.sflag [#allocation4], 1
    %383 = vsyncpa %s382, 1

</llo_original>
